<compile_context>
chip_gen: v7x
topology: tpu7x:2x2x1
jax: 0.10.0
libtpu: 0.0.40
codegen_flags: <defaults>
</compile_context>

<pallas_src>
import functools

import jax
import jax.numpy as jnp
from jax.experimental import pallas as pl
from jax.experimental.pallas import tpu as pltpu


def _round_up(x, m):
    return ((x + m - 1) // m) * m


def conv_bn_hswish_kernel(x_ref, w_ref, s_ref, b_ref, o_ref, *, fh, fw, stride):
    # x_ref: (1, Hp, Cin_p, Wp)       bf16  zero-padded input image (resident)
    # w_ref: (fh*fw, Cout_p, Cin_p)   bf16  conv weights, one slab per tap
    # s_ref: (Cout_p, 1)              f32   folded BN scale   gamma / sqrt(var+eps)
    # b_ref: (Cout_p, 1)              f32   folded BN bias    beta - mean * scale
    # o_ref: (1, band_h, Cout_p, Wo)  output row band
    band_h = o_ref.shape[1]
    cout_p = o_ref.shape[2]
    wo = o_ref.shape[3]

    row0 = pl.program_id(1) * band_h                    # first output row of this band
    scale = jnp.broadcast_to(s_ref[...], (cout_p, wo))  # hoisted out of the row loop
    bias = jnp.broadcast_to(b_ref[...], (cout_p, wo))

    def row_body(oh, carry):
        r0 = (row0 + oh) * stride                       # first input row of the window
        acc = jnp.zeros((cout_p, wo), jnp.float32)
        for i in range(fh):                             # static tap loops (fh*fw small)
            row = x_ref[0, r0 + i, :, :]                # (Cin_p, Wp) natural VMEM window
            for j in range(fw):
                # tap window: columns j, j+stride, ... (static start/stride)
                tap = row[:, j:j + (wo - 1) * stride + 1:stride]   # (Cin_p, Wo)
                acc = acc + jnp.dot(w_ref[i * fw + j], tap,
                                    preferred_element_type=jnp.float32)
        y = acc * scale + bias                          # eval-mode BN, f32
        y = y * jnp.clip(y + 3.0, 0.0, 6.0) * (1.0 / 6.0)   # hard_swish
        o_ref[0, oh, :, :] = y.astype(o_ref.dtype)      # (Cout_p, Wo) aligned store
        return carry

    jax.lax.fori_loop(0, band_h, row_body, 0)


def conv_bn_layer(x_nchw, weight, gamma, beta, running_mean, running_var,
                  stride=1, padding=1, eps=1e-5, band_rows=32, out_dtype=None):
    """Forward pass of ConvBNLayer (groups=1, no conv bias, act='hard_swish').

    Eval-mode BatchNorm (running statistics folded into scale/bias). The conv
    is computed with a fused in-kernel im2col: the input is read from HBM once.
    """
    Cout, Cin, fh, fw = weight.shape
    N, C, H, W = x_nchw.shape
    assert C == Cin, "grouped conv not supported (num_groups=1 only)"
    if out_dtype is None:
        out_dtype = x_nchw.dtype

    Ho = (H + 2 * padding - fh) // stride + 1
    Wo = (W + 2 * padding - fw) // stride + 1

    # Channel padding: multiples of 16 (bf16 sublane packing) for both Cin/Cout.
    Cin_p = _round_up(Cin, 16)
    Cout_p = _round_up(Cout, 16)

    # Row-band grid: bounds the output VMEM block and gives the pipeline more
    # steps than grid=(N,) alone.
    band_h = min(band_rows, Ho)
    n_bands = pl.cdiv(Ho, band_h)
    Ho_pad = n_bands * band_h

    # Padded input extents. Extra bottom rows (for Ho_pad > Ho) are zeros, so
    # the garbage band rows compute finite values that are sliced off below.
    Hp_need = (Ho_pad - 1) * stride + fh
    Hp_arr = max(Hp_need, H + 2 * padding)
    Wp = W + 2 * padding
    pad_h_hi = Hp_arr - H - padding          # >= padding

    # ---- glue (plain JAX): zero-pad + channel-inner layout + BN folding ----
    xp = jnp.pad(x_nchw, ((0, 0), (0, Cin_p - Cin),
                          (padding, pad_h_hi), (padding, padding)))
    # NCHW -> (N, Hp, Cin_p, Wp): per-row tap windows become natural
    # (channels, width) VMEM tiles (minor-2 dims of the ref).
    xp = jnp.transpose(xp, (0, 2, 1, 3)).astype(jnp.bfloat16)

    # Weights: (Cout, Cin, fh, fw) -> (fh*fw, Cout_p, Cin_p), one slab per tap.
    w_taps = jnp.transpose(weight, (2, 3, 0, 1)).reshape(fh * fw, Cout, Cin)
    w_taps = jnp.pad(w_taps, ((0, 0), (0, Cout_p - Cout), (0, Cin_p - Cin)))
    w_taps = w_taps.astype(jnp.bfloat16)

    # Eval-mode BatchNorm folded into per-channel scale/bias (applied in f32).
    inv_std = jax.lax.rsqrt(running_var.astype(jnp.float32) + eps)
    scale = gamma.astype(jnp.float32) * inv_std
    bias = beta.astype(jnp.float32) - running_mean.astype(jnp.float32) * scale
    scale = jnp.pad(scale, (0, Cout_p - Cout)).reshape(Cout_p, 1)
    bias = jnp.pad(bias, (0, Cout_p - Cout)).reshape(Cout_p, 1)

    out_isz = jnp.dtype(out_dtype).itemsize

    # VMEM budget (double buffers counted, including the constant-index weights).
    vmem_needed = (2 * Hp_arr * Cin_p * Wp * 2            # input image, bf16
                   + 2 * fh * fw * Cout_p * Cin_p * 2     # weights, bf16
                   + 2 * 2 * Cout_p * 4                   # scale + bias, f32
                   + 2 * band_h * Cout_p * Wo * out_isz)  # output band
    try:
        info = pltpu.get_tpu_info()
        vmem_cap = int(getattr(info, "vmem_capacity_bytes", 64 << 20))
    except Exception:                                      # pragma: no cover
        vmem_cap = 64 << 20
    vmem_limit = int(min(max(2 * vmem_needed, 32 << 20), (vmem_cap * 3) // 4))

    # True (unpadded) flops and fused traffic (input read once).
    cost = pl.CostEstimate(
        flops=2 * N * Ho * Wo * fh * fw * Cin * Cout,
        transcendentals=0,
        bytes_accessed=int(N * Hp_arr * Cin_p * Wp * 2
                           + fh * fw * Cout_p * Cin_p * 2
                           + 2 * Cout_p * 4
                           + N * Ho_pad * Cout_p * Wo * out_isz))

    # ---- hot path: fused im2col + tap matmuls + BN bias + hard_swish ----
    out = pl.pallas_call(
        functools.partial(conv_bn_hswish_kernel, fh=fh, fw=fw, stride=stride),
        out_shape=jax.ShapeDtypeStruct((N, Ho_pad, Cout_p, Wo), out_dtype),
        grid_spec=pltpu.PrefetchScalarGridSpec(
            num_scalar_prefetch=0,
            grid=(N, n_bands),
            in_specs=[
                # Full padded image per batch element; constant over the band
                # axis -> DMA'd from HBM only when n changes (fused im2col).
                pl.BlockSpec((1, Hp_arr, Cin_p, Wp), lambda n, b: (n, 0, 0, 0)),
                pl.BlockSpec((fh * fw, Cout_p, Cin_p), lambda n, b: (0, 0, 0)),
                pl.BlockSpec((Cout_p, 1), lambda n, b: (0, 0)),
                pl.BlockSpec((Cout_p, 1), lambda n, b: (0, 0)),
            ],
            out_specs=pl.BlockSpec((1, band_h, Cout_p, Wo),
                                   lambda n, b: (n, b, 0, 0)),
        ),
        compiler_params=pltpu.CompilerParams(
            dimension_semantics=("parallel", "arbitrary"),
            vmem_limit_bytes=vmem_limit),
        cost_estimate=cost,
    )(xp, w_taps, scale, bias)

    # Drop row/channel padding and go back to NCHW.
    out = out[:, :Ho, :Cout, :]
    return jnp.transpose(out, (0, 2, 1, 3))


def reference_conv_bn(x_nchw, weight, gamma, beta, mean, var,
                      stride=1, padding=1, eps=1e-5):
    """Pure-JAX reference for correctness checking."""
    y = jax.lax.conv_general_dilated(
        x_nchw, weight, window_strides=(stride, stride),
        padding=[(padding, padding), (padding, padding)],
        dimension_numbers=('NCHW', 'OIHW', 'NCHW'))
    scale = (gamma / jnp.sqrt(var + eps)).reshape(1, -1, 1, 1)
    bias = (beta - mean * gamma / jnp.sqrt(var + eps)).reshape(1, -1, 1, 1)
    y = y * scale + bias
    return y * jnp.clip(y + 3.0, 0.0, 6.0) / 6.0


if __name__ == "__main__":
    # Shapes consistent with the module: ConvBNLayer(num_channels=4,
    # filter_size=3, num_filters=8, stride=1, padding=1)
    N, Cin, H, W = 2, 4, 16, 16
    Cout, fh, fw = 8, 3, 3
    stride, padding = 1, 1

    key = jax.random.PRNGKey(0)
    k_x, k_w, k_g, k_b, k_m, k_v = jax.random.split(key, 6)

    x = jax.random.normal(k_x, (N, Cin, H, W), dtype=jnp.float32)
    weight = 0.1 * jax.random.normal(k_w, (Cout, Cin, fh, fw), dtype=jnp.float32)
    gamma = 1.0 + 0.1 * jax.random.normal(k_g, (Cout,), dtype=jnp.float32)
    beta = 0.1 * jax.random.normal(k_b, (Cout,), dtype=jnp.float32)
    running_mean = 0.1 * jax.random.normal(k_m, (Cout,), dtype=jnp.float32)
    running_var = jnp.abs(jax.random.normal(k_v, (Cout,), dtype=jnp.float32)) + 0.5

    y = conv_bn_layer(x, weight, gamma, beta, running_mean, running_var,
                      stride=stride, padding=padding)
    y = jax.block_until_ready(y)

    y_ref = reference_conv_bn(x, weight, gamma, beta, running_mean, running_var,
                              stride=stride, padding=padding)
    y_ref = jax.block_until_ready(y_ref)

    assert y.shape == (N, Cout, H, W), y.shape
    # bf16 MXU operands with f32 accumulation: slightly looser tolerance than f32.
    assert jnp.allclose(y, y_ref, atol=2e-2, rtol=2e-2), \
        f"max abs err {float(jnp.max(jnp.abs(y - y_ref)))}"

    print("KERNEL_OK")
</pallas_src>

<mosaic_0001>
module attributes {stable_mosaic.version = 11 : i64} {
  func.func @conv_bn_hswish_kernel(%arg0: i32, %arg1: i32, %arg2: memref<1x18x16x18xbf16, #tpu.memory_space<vmem>>, %arg3: memref<9x16x16xbf16, #tpu.memory_space<vmem>>, %arg4: memref<16x1xf32, #tpu.memory_space<vmem>>, %arg5: memref<16x1xf32, #tpu.memory_space<vmem>>, %arg6: memref<1x16x16x16xf32, #tpu.memory_space<vmem>>) attributes {dimension_semantics = [#tpu.dimension_semantics<parallel>, #tpu.dimension_semantics<arbitrary>], iteration_bounds = array<i64: 2, 1>, scalar_prefetch = 0 : i64, scratch_operands = 0 : i64, tpu.core_type = #tpu.core_type<tc>, window_params = [{transform_indices = @transform_0, window_bounds = array<i64: 1, 18, 16, 18>}, {pipeline_mode = #tpu.pipeline_mode<synchronous>, transform_indices = @transform_1, window_bounds = array<i64: 9, 16, 16>}, {pipeline_mode = #tpu.pipeline_mode<synchronous>, transform_indices = @transform_2, window_bounds = array<i64: 16, 1>}, {pipeline_mode = #tpu.pipeline_mode<synchronous>, transform_indices = @transform_3, window_bounds = array<i64: 16, 1>}, {transform_indices = @transform_4, window_bounds = array<i64: 1, 16, 16, 16>}]} {
    %c16_i32 = arith.constant 16 : i32
    %0 = arith.muli %arg1, %c16_i32 : i32
    %c0 = arith.constant 0 : index
    %c0_0 = arith.constant 0 : index
    %1 = vector.load %arg4[%c0, %c0_0] : memref<16x1xf32, #tpu.memory_space<vmem>>, vector<16x1xf32>
    %2 = vector.shape_cast %1 : vector<16x1xf32> to vector<16x1xf32>
    %3 = vector.broadcast %2 : vector<16x1xf32> to vector<16x16xf32>
    %c0_1 = arith.constant 0 : index
    %c0_2 = arith.constant 0 : index
    %4 = vector.load %arg5[%c0_1, %c0_2] : memref<16x1xf32, #tpu.memory_space<vmem>>, vector<16x1xf32>
    %5 = vector.shape_cast %4 : vector<16x1xf32> to vector<16x1xf32>
    %6 = vector.broadcast %5 : vector<16x1xf32> to vector<16x16xf32>
    %c0_i32 = arith.constant 0 : i32
    %c16_i32_3 = arith.constant 16 : i32
    %7 = arith.addi %c0_i32, %c16_i32_3 : i32
    %c1_i32 = arith.constant 1 : i32
    scf.for %arg7 = %c0_i32 to %7 step %c1_i32  : i32 {
      %8 = arith.addi %0, %arg7 : i32
      %c1_i32_5 = arith.constant 1 : i32
      %9 = arith.muli %8, %c1_i32_5 : i32
      %cst = arith.constant 0.000000e+00 : f32
      %10 = vector.broadcast %cst : f32 to vector<16x16xf32>
      %c0_i32_6 = arith.constant 0 : i32
      %11 = arith.addi %9, %c0_i32_6 : i32
      %c0_7 = arith.constant 0 : index
      %12 = arith.index_cast %11 : i32 to index
      %c0_8 = arith.constant 0 : index
      %c0_9 = arith.constant 0 : index
      %13 = vector.load %arg2[%c0_7, %12, %c0_8, %c0_9] : memref<1x18x16x18xbf16, #tpu.memory_space<vmem>>, vector<1x1x16x18xbf16>
      %14 = vector.shape_cast %13 : vector<1x1x16x18xbf16> to vector<16x18xbf16>
      %15 = vector.extract_strided_slice %14 {offsets = [0, 0], sizes = [16, 16], strides = [1, 1]} : vector<16x18xbf16> to vector<16x16xbf16>
      %c0_10 = arith.constant 0 : index
      %c0_11 = arith.constant 0 : index
      %c0_12 = arith.constant 0 : index
      %16 = vector.load %arg3[%c0_10, %c0_11, %c0_12] : memref<9x16x16xbf16, #tpu.memory_space<vmem>>, vector<1x16x16xbf16>
      %17 = vector.shape_cast %16 : vector<1x16x16xbf16> to vector<16x16xbf16>
      %cst_13 = arith.constant dense<0.000000e+00> : vector<16x16xf32>
      %18 = tpu.matmul %17, %15, %cst_13 {dimension_numbers = #tpu.dot_dimension_numbers<[1], [0], [0], [1], [0, 0, 1, 1], [], []>} : vector<16x16xbf16>, vector<16x16xbf16>, vector<16x16xf32> -> vector<16x16xf32>
      %19 = arith.addf %10, %18 : vector<16x16xf32>
      %20 = vector.extract_strided_slice %14 {offsets = [0, 1], sizes = [16, 16], strides = [1, 1]} : vector<16x18xbf16> to vector<16x16xbf16>
      %c1 = arith.constant 1 : index
      %c0_14 = arith.constant 0 : index
      %c0_15 = arith.constant 0 : index
      %21 = vector.load %arg3[%c1, %c0_14, %c0_15] : memref<9x16x16xbf16, #tpu.memory_space<vmem>>, vector<1x16x16xbf16>
      %22 = vector.shape_cast %21 : vector<1x16x16xbf16> to vector<16x16xbf16>
      %cst_16 = arith.constant dense<0.000000e+00> : vector<16x16xf32>
      %23 = tpu.matmul %22, %20, %cst_16 {dimension_numbers = #tpu.dot_dimension_numbers<[1], [0], [0], [1], [0, 0, 1, 1], [], []>} : vector<16x16xbf16>, vector<16x16xbf16>, vector<16x16xf32> -> vector<16x16xf32>
      %24 = arith.addf %19, %23 : vector<16x16xf32>
      %25 = vector.extract_strided_slice %14 {offsets = [0, 2], sizes = [16, 16], strides = [1, 1]} : vector<16x18xbf16> to vector<16x16xbf16>
      %c2 = arith.constant 2 : index
      %c0_17 = arith.constant 0 : index
      %c0_18 = arith.constant 0 : index
      %26 = vector.load %arg3[%c2, %c0_17, %c0_18] : memref<9x16x16xbf16, #tpu.memory_space<vmem>>, vector<1x16x16xbf16>
      %27 = vector.shape_cast %26 : vector<1x16x16xbf16> to vector<16x16xbf16>
      %cst_19 = arith.constant dense<0.000000e+00> : vector<16x16xf32>
      %28 = tpu.matmul %27, %25, %cst_19 {dimension_numbers = #tpu.dot_dimension_numbers<[1], [0], [0], [1], [0, 0, 1, 1], [], []>} : vector<16x16xbf16>, vector<16x16xbf16>, vector<16x16xf32> -> vector<16x16xf32>
      %29 = arith.addf %24, %28 : vector<16x16xf32>
      %c1_i32_20 = arith.constant 1 : i32
      %30 = arith.addi %9, %c1_i32_20 : i32
      %c0_21 = arith.constant 0 : index
      %31 = arith.index_cast %30 : i32 to index
      %c0_22 = arith.constant 0 : index
      %c0_23 = arith.constant 0 : index
      %32 = vector.load %arg2[%c0_21, %31, %c0_22, %c0_23] : memref<1x18x16x18xbf16, #tpu.memory_space<vmem>>, vector<1x1x16x18xbf16>
      %33 = vector.shape_cast %32 : vector<1x1x16x18xbf16> to vector<16x18xbf16>
      %34 = vector.extract_strided_slice %33 {offsets = [0, 0], sizes = [16, 16], strides = [1, 1]} : vector<16x18xbf16> to vector<16x16xbf16>
      %c3 = arith.constant 3 : index
      %c0_24 = arith.constant 0 : index
      %c0_25 = arith.constant 0 : index
      %35 = vector.load %arg3[%c3, %c0_24, %c0_25] : memref<9x16x16xbf16, #tpu.memory_space<vmem>>, vector<1x16x16xbf16>
      %36 = vector.shape_cast %35 : vector<1x16x16xbf16> to vector<16x16xbf16>
      %cst_26 = arith.constant dense<0.000000e+00> : vector<16x16xf32>
      %37 = tpu.matmul %36, %34, %cst_26 {dimension_numbers = #tpu.dot_dimension_numbers<[1], [0], [0], [1], [0, 0, 1, 1], [], []>} : vector<16x16xbf16>, vector<16x16xbf16>, vector<16x16xf32> -> vector<16x16xf32>
      %38 = arith.addf %29, %37 : vector<16x16xf32>
      %39 = vector.extract_strided_slice %33 {offsets = [0, 1], sizes = [16, 16], strides = [1, 1]} : vector<16x18xbf16> to vector<16x16xbf16>
      %c4 = arith.constant 4 : index
      %c0_27 = arith.constant 0 : index
      %c0_28 = arith.constant 0 : index
      %40 = vector.load %arg3[%c4, %c0_27, %c0_28] : memref<9x16x16xbf16, #tpu.memory_space<vmem>>, vector<1x16x16xbf16>
      %41 = vector.shape_cast %40 : vector<1x16x16xbf16> to vector<16x16xbf16>
      %cst_29 = arith.constant dense<0.000000e+00> : vector<16x16xf32>
      %42 = tpu.matmul %41, %39, %cst_29 {dimension_numbers = #tpu.dot_dimension_numbers<[1], [0], [0], [1], [0, 0, 1, 1], [], []>} : vector<16x16xbf16>, vector<16x16xbf16>, vector<16x16xf32> -> vector<16x16xf32>
      %43 = arith.addf %38, %42 : vector<16x16xf32>
      %44 = vector.extract_strided_slice %33 {offsets = [0, 2], sizes = [16, 16], strides = [1, 1]} : vector<16x18xbf16> to vector<16x16xbf16>
      %c5 = arith.constant 5 : index
      %c0_30 = arith.constant 0 : index
      %c0_31 = arith.constant 0 : index
      %45 = vector.load %arg3[%c5, %c0_30, %c0_31] : memref<9x16x16xbf16, #tpu.memory_space<vmem>>, vector<1x16x16xbf16>
      %46 = vector.shape_cast %45 : vector<1x16x16xbf16> to vector<16x16xbf16>
      %cst_32 = arith.constant dense<0.000000e+00> : vector<16x16xf32>
      %47 = tpu.matmul %46, %44, %cst_32 {dimension_numbers = #tpu.dot_dimension_numbers<[1], [0], [0], [1], [0, 0, 1, 1], [], []>} : vector<16x16xbf16>, vector<16x16xbf16>, vector<16x16xf32> -> vector<16x16xf32>
      %48 = arith.addf %43, %47 : vector<16x16xf32>
      %c2_i32 = arith.constant 2 : i32
      %49 = arith.addi %9, %c2_i32 : i32
      %c0_33 = arith.constant 0 : index
      %50 = arith.index_cast %49 : i32 to index
      %c0_34 = arith.constant 0 : index
      %c0_35 = arith.constant 0 : index
      %51 = vector.load %arg2[%c0_33, %50, %c0_34, %c0_35] : memref<1x18x16x18xbf16, #tpu.memory_space<vmem>>, vector<1x1x16x18xbf16>
      %52 = vector.shape_cast %51 : vector<1x1x16x18xbf16> to vector<16x18xbf16>
      %53 = vector.extract_strided_slice %52 {offsets = [0, 0], sizes = [16, 16], strides = [1, 1]} : vector<16x18xbf16> to vector<16x16xbf16>
      %c6 = arith.constant 6 : index
      %c0_36 = arith.constant 0 : index
      %c0_37 = arith.constant 0 : index
      %54 = vector.load %arg3[%c6, %c0_36, %c0_37] : memref<9x16x16xbf16, #tpu.memory_space<vmem>>, vector<1x16x16xbf16>
      %55 = vector.shape_cast %54 : vector<1x16x16xbf16> to vector<16x16xbf16>
      %cst_38 = arith.constant dense<0.000000e+00> : vector<16x16xf32>
      %56 = tpu.matmul %55, %53, %cst_38 {dimension_numbers = #tpu.dot_dimension_numbers<[1], [0], [0], [1], [0, 0, 1, 1], [], []>} : vector<16x16xbf16>, vector<16x16xbf16>, vector<16x16xf32> -> vector<16x16xf32>
      %57 = arith.addf %48, %56 : vector<16x16xf32>
      %58 = vector.extract_strided_slice %52 {offsets = [0, 1], sizes = [16, 16], strides = [1, 1]} : vector<16x18xbf16> to vector<16x16xbf16>
      %c7 = arith.constant 7 : index
      %c0_39 = arith.constant 0 : index
      %c0_40 = arith.constant 0 : index
      %59 = vector.load %arg3[%c7, %c0_39, %c0_40] : memref<9x16x16xbf16, #tpu.memory_space<vmem>>, vector<1x16x16xbf16>
      %60 = vector.shape_cast %59 : vector<1x16x16xbf16> to vector<16x16xbf16>
      %cst_41 = arith.constant dense<0.000000e+00> : vector<16x16xf32>
      %61 = tpu.matmul %60, %58, %cst_41 {dimension_numbers = #tpu.dot_dimension_numbers<[1], [0], [0], [1], [0, 0, 1, 1], [], []>} : vector<16x16xbf16>, vector<16x16xbf16>, vector<16x16xf32> -> vector<16x16xf32>
      %62 = arith.addf %57, %61 : vector<16x16xf32>
      %63 = vector.extract_strided_slice %52 {offsets = [0, 2], sizes = [16, 16], strides = [1, 1]} : vector<16x18xbf16> to vector<16x16xbf16>
      %c8 = arith.constant 8 : index
      %c0_42 = arith.constant 0 : index
      %c0_43 = arith.constant 0 : index
      %64 = vector.load %arg3[%c8, %c0_42, %c0_43] : memref<9x16x16xbf16, #tpu.memory_space<vmem>>, vector<1x16x16xbf16>
      %65 = vector.shape_cast %64 : vector<1x16x16xbf16> to vector<16x16xbf16>
      %cst_44 = arith.constant dense<0.000000e+00> : vector<16x16xf32>
      %66 = tpu.matmul %65, %63, %cst_44 {dimension_numbers = #tpu.dot_dimension_numbers<[1], [0], [0], [1], [0, 0, 1, 1], [], []>} : vector<16x16xbf16>, vector<16x16xbf16>, vector<16x16xf32> -> vector<16x16xf32>
      %67 = arith.addf %62, %66 : vector<16x16xf32>
      %68 = arith.mulf %67, %3 : vector<16x16xf32>
      %69 = arith.addf %68, %6 : vector<16x16xf32>
      %cst_45 = arith.constant 3.000000e+00 : f32
      %70 = vector.broadcast %cst_45 : f32 to vector<16x16xf32>
      %71 = arith.addf %69, %70 : vector<16x16xf32>
      %cst_46 = arith.constant 0.000000e+00 : f32
      %cst_47 = arith.constant 6.000000e+00 : f32
      %72 = vector.broadcast %cst_46 : f32 to vector<16x16xf32>
      %73 = arith.maximumf %72, %71 : vector<16x16xf32>
      %74 = vector.broadcast %cst_47 : f32 to vector<16x16xf32>
      %75 = arith.minimumf %74, %73 : vector<16x16xf32>
      %76 = arith.mulf %69, %75 : vector<16x16xf32>
      %cst_48 = arith.constant 0.166666672 : f32
      %77 = vector.broadcast %cst_48 : f32 to vector<16x16xf32>
      %78 = arith.mulf %76, %77 : vector<16x16xf32>
      %c0_49 = arith.constant 0 : index
      %79 = arith.index_cast %arg7 : i32 to index
      %c0_50 = arith.constant 0 : index
      %c0_51 = arith.constant 0 : index
      %80 = vector.load %arg6[%c0_49, %79, %c0_50, %c0_51] : memref<1x16x16x16xf32, #tpu.memory_space<vmem>>, vector<1x1x16x16xf32>
      %81 = vector.shape_cast %80 : vector<1x1x16x16xf32> to vector<16x16xf32>
      %82 = vector.shape_cast %78 : vector<16x16xf32> to vector<1x1x16x16xf32>
      tpu.vector_store %arg6[%c0_49, %79, %c0_50, %c0_51], %82 {strides = array<i32>} : memref<1x16x16x16xf32, #tpu.memory_space<vmem>>, vector<1x1x16x16xf32>,
    }
    %c16_i32_4 = arith.constant 16 : i32
    return
  }
  func.func @transform_0(%arg0: i32, %arg1: i32) -> (i32, i32, i32, i32) {
    %c0_i32 = arith.constant 0 : i32
    %c0_i32_0 = arith.constant 0 : i32
    %c0_i32_1 = arith.constant 0 : i32
    %c0_i32_2 = arith.constant 0 : i32
    return %arg0, %c0_i32, %c0_i32_0, %c0_i32_1 : i32, i32, i32, i32
  }
  func.func @transform_1(%arg0: i32, %arg1: i32) -> (i32, i32, i32) {
    %c0_i32 = arith.constant 0 : i32
    %c0_i32_0 = arith.constant 0 : i32
    %c0_i32_1 = arith.constant 0 : i32
    %c0_i32_2 = arith.constant 0 : i32
    return %c0_i32, %c0_i32_0, %c0_i32_1 : i32, i32, i32
  }
  func.func @transform_2(%arg0: i32, %arg1: i32) -> (i32, i32) {
    %c0_i32 = arith.constant 0 : i32
    %c0_i32_0 = arith.constant 0 : i32
    %c0_i32_1 = arith.constant 0 : i32
    return %c0_i32, %c0_i32_0 : i32, i32
  }
  func.func @transform_3(%arg0: i32, %arg1: i32) -> (i32, i32) {
    %c0_i32 = arith.constant 0 : i32
    %c0_i32_0 = arith.constant 0 : i32
    %c0_i32_1 = arith.constant 0 : i32
    return %c0_i32, %c0_i32_0 : i32, i32
  }
  func.func @transform_4(%arg0: i32, %arg1: i32) -> (i32, i32, i32, i32) {
    %c0_i32 = arith.constant 0 : i32
    %c0_i32_0 = arith.constant 0 : i32
    %c0_i32_1 = arith.constant 0 : i32
    return %arg0, %arg1, %c0_i32, %c0_i32_0 : i32, i32, i32, i32
  }
}

</mosaic_0001>

<llo_original>
// kernel: tpu_custom_call.1
$region0: #{tpu_custom_call.1}
  #allocation0 [shape = 'u32[]', space=smem, size = 0x4, offset = 0x4, fixed_abs, tag = 'smem constant byte address 0x4 - core index']
  #allocation1 [shape = 'u32[144,128]{1,0:T(1,128)}', space=vmem, size = 0x12000, scoped, tag = 'internal scratch']
  %s0 = inlined_call_operand.hbm [shape: bf16[2,18,16,18], index: 0, kind: input, shape index: {}]
  %s1 = inlined_call_operand.hbm [shape: bf16[9,16,16], index: 1, kind: input, shape index: {}]
  %s2 = inlined_call_operand.vmem [shape: f32[16,1], index: 2, kind: input, shape index: {}]
  %s3 = inlined_call_operand.vmem [shape: f32[16,1], index: 3, kind: input, shape index: {}]
  %s4 = inlined_call_operand.hbm [shape: f32[2,16,16,16], index: 4, kind: output, shape index: {}]
  %s5 = sld [smem:[#allocation0]]
  $region64: #{tpu_custom_call.1} parent=0
    _
  %s7 = ssub.s32 1, %s5
  %s8 = scalar_select 0, %s7, %s5
  $region1: #{tpu_custom_call.1} parent=0
    #allocation2 [shape = 'u8[147456]{0}', space=vmem, size = 0x24000, scoped, tag = 'input window, operand 0']
    #allocation3 [shape = 's32[2]{0}', space=sflag, size = 0x8, scoped, tag = 'scoped memory for tpu_custom_call.1']
    #allocation4 [shape = 's32[2]{0}', space=sflag, size = 0x8, scoped, tag = 'scoped memory for tpu_custom_call.1']
    #allocation5 [shape = 'u8[36864]{0}', space=vmem, size = 0x9000, scoped, tag = 'input window, operand 1, single buffered']
    #allocation6 [shape = 's32[1]{0}', space=sflag, size = 0x4, scoped, tag = 'scoped memory for tpu_custom_call.1']
    #allocation7 [shape = 'u8[262144]{0}', space=vmem, size = 0x40000, scoped, tag = 'output window, operand 0']
    %9 = vsyncpa [#allocation3], 0
    %s10 = scalar_lea.sflag [#allocation3], 1
    %11 = vsyncpa %s10, 0
    %12 = vsyncpa [#allocation6], 0
    %13 = vsyncpa [#allocation4], 0
    %s14 = scalar_lea.sflag [#allocation4], 1
    %15 = vsyncpa %s14, 0
    loop: start=0, step=1, limit=4
    $region2: #{tpu_custom_call.1} parent=1 // loop_pre_header
      _
    $region3: #{tpu_custom_call.1} parent=1 // loop_header
      %s17 = sphi 0, %s21
      %p18 = scmp.ge.s32.totalorder %s17, 4
      %s24 = sphi 0, %s36
      %s25 = sphi 0, %s32
      %s26 = sphi 0, %s24
      %s27 = sphi 0, %s25
      %s28 = sphi 0, %s26
      %s29 = sphi 0, %s27
      %s39 = sphi 0, %s41
      %s42 = sphi 0, %s39
      %s43 = sphi 0, %s42
      %s59 = sphi 0, %s43
      %s63 = sphi 0, %s63
      %s65 = sphi 0, %s63
      %s66 = sphi 0, %s65
      %s80 = sphi 0, %s66
      %s84 = sphi 0, %s84
      %s86 = sphi 0, %s84
      %s87 = sphi 0, %s86
      %s101 = sphi 0, %s87
      %s105 = sphi 0, %s105
      %s107 = sphi 0, %s105
      %s108 = sphi 0, %s107
      %s122 = sphi 0, %s108
      %s130 = sphi 0, %s132
      %s133 = sphi 0, %s130
      %s134 = sphi 0, %s133
      %s150 = sphi 0, %s134
    $region4: #{tpu_custom_call.1} parent=1 // loop_header_branch
      %20 = sbr.rel (%p18) target = $region8
    $region5: #{tpu_custom_call.1} parent=1 // loop_body
      %s22 = ssub.s32 %s17, 1
      %s23 = ssub.s32 %s17, 2
      %s30 = sadd.s32 1, %s25
      %p31 = scmp.ge.s32.totalorder %s30, 1
      %s32 = scalar_select %p31, 0, %s30
      %s33 = sadd.s32 1, %s24
      %s34 = scalar_select %p31, %s33, %s24
      %p35 = scmp.ge.s32.totalorder %s34, 2
      %s36 = scalar_select %p35, 0, %s34
      %s37 = ssub.s32 %s24, %s36
      %p38 = scmp.eq.s32.totalorder %s37, 0
      %s40 = sadd.s32 %s39, 1
      %s41 = scalar_select %p38, %s39, %s40
      %p44 = pneg %p38
      %p45 = scmp.eq.s32.totalorder %s17, 1
      %p46 = por %p44, %p45
      %p47 = scmp.ne.s32.totalorder %s39, %s42
      %p48 = scmp.eq.s32.totalorder %s17, 0
      %p49 = por %p47, %p48
      %p50 = scmp.ne.s32.totalorder %s39, %s42
      %p51 = scmp.eq.s32.totalorder %s22, 1
      %p52 = por %p50, %p51
      %p53 = scmp.ne.s32.totalorder %s42, %s43
      %p54 = scmp.eq.s32.totalorder %s22, 0
      %p55 = por %p53, %p54
      %p56 = scmp.ne.s32.totalorder %s42, %s43
      %p57 = scmp.eq.s32.totalorder %s23, 1
      %p58 = por %p56, %p57
      %p60 = scmp.ne.s32.totalorder %s43, %s59
      %p61 = scmp.eq.s32.totalorder %s23, 0
      %p62 = por %p60, %p61
      %s64 = sadd.s32 %s63, 1
      %p67 = scmp.eq.s32.totalorder %s17, 1
      %p68 = scmp.ne.s32.totalorder %s63, %s65
      %p69 = scmp.eq.s32.totalorder %s17, 0
      %p70 = por %p68, %p69
      %p71 = scmp.ne.s32.totalorder %s63, %s65
      %p72 = scmp.eq.s32.totalorder %s22, 1
      %p73 = por %p71, %p72
      %p74 = scmp.ne.s32.totalorder %s65, %s66
      %p75 = scmp.eq.s32.totalorder %s22, 0
      %p76 = por %p74, %p75
      %p77 = scmp.ne.s32.totalorder %s65, %s66
      %p78 = scmp.eq.s32.totalorder %s23, 1
      %p79 = por %p77, %p78
      %p81 = scmp.ne.s32.totalorder %s66, %s80
      %p82 = scmp.eq.s32.totalorder %s23, 0
      %p83 = por %p81, %p82
      %s85 = sadd.s32 %s84, 1
      %p88 = scmp.eq.s32.totalorder %s17, 1
      %p89 = scmp.ne.s32.totalorder %s84, %s86
      %p90 = scmp.eq.s32.totalorder %s17, 0
      %p91 = por %p89, %p90
      %p92 = scmp.ne.s32.totalorder %s84, %s86
      %p93 = scmp.eq.s32.totalorder %s22, 1
      %p94 = por %p92, %p93
      %p95 = scmp.ne.s32.totalorder %s86, %s87
      %p96 = scmp.eq.s32.totalorder %s22, 0
      %p97 = por %p95, %p96
      %p98 = scmp.ne.s32.totalorder %s86, %s87
      %p99 = scmp.eq.s32.totalorder %s23, 1
      %p100 = por %p98, %p99
      %p102 = scmp.ne.s32.totalorder %s87, %s101
      %p103 = scmp.eq.s32.totalorder %s23, 0
      %p104 = por %p102, %p103
      %s106 = sadd.s32 %s105, 1
      %p109 = scmp.eq.s32.totalorder %s17, 1
      %p110 = scmp.ne.s32.totalorder %s105, %s107
      %p111 = scmp.eq.s32.totalorder %s17, 0
      %p112 = por %p110, %p111
      %p113 = scmp.ne.s32.totalorder %s105, %s107
      %p114 = scmp.eq.s32.totalorder %s22, 1
      %p115 = por %p113, %p114
      %p116 = scmp.ne.s32.totalorder %s107, %s108
      %p117 = scmp.eq.s32.totalorder %s22, 0
      %p118 = por %p116, %p117
      %p119 = scmp.ne.s32.totalorder %s107, %s108
      %p120 = scmp.eq.s32.totalorder %s23, 1
      %p121 = por %p119, %p120
      %p123 = scmp.ne.s32.totalorder %s108, %s122
      %p124 = scmp.eq.s32.totalorder %s23, 0
      %p125 = por %p123, %p124
      %s126 = ssub.s32 %s24, %s36
      %s127 = ssub.s32 %s25, %s32
      %s128 = sor.u32 %s126, %s127
      %p129 = scmp.eq.s32.totalorder %s128, 0
      %s131 = sadd.s32 %s130, 1
      %s132 = scalar_select %p129, %s130, %s131
      %p135 = pneg %p129
      %p136 = scmp.eq.s32.totalorder %s17, 1
      %p137 = por %p135, %p136
      %p138 = scmp.ne.s32.totalorder %s130, %s133
      %p139 = scmp.eq.s32.totalorder %s17, 0
      %p140 = por %p138, %p139
      %p141 = scmp.ne.s32.totalorder %s130, %s133
      %p142 = scmp.eq.s32.totalorder %s22, 1
      %p143 = por %p141, %p142
      %p144 = scmp.ne.s32.totalorder %s133, %s134
      %p145 = scmp.eq.s32.totalorder %s22, 0
      %p146 = por %p144, %p145
      %p147 = scmp.ne.s32.totalorder %s133, %s134
      %p148 = scmp.eq.s32.totalorder %s23, 1
      %p149 = por %p147, %p148
      %p151 = scmp.ne.s32.totalorder %s134, %s150
      %p152 = scmp.eq.s32.totalorder %s23, 0
      %p153 = por %p151, %p152
      %p154 = scmp.le.s32.totalorder 1, %s17
      %p155 = scmp.lt.s32.totalorder %s17, 3
      %p156 = pnand %p154, %p155
      %p157 = pneg %p156
      // Predicated region
      $region9: #{tpu_custom_call.1} parent=5 // pred_check
        _
      $region10: #{tpu_custom_call.1} parent=5 // pred_check_branch
        %159 = sbr.rel (%p156) target = $region12
      $region11: #{tpu_custom_call.1} parent=5 // pred_region
        %s160 = ssub.s32 %s17, 1
        // Predicated region
        $region13: #{tpu_custom_call.1} parent=11 // pred_check
          %p161 = pneg %p76
        $region14: #{tpu_custom_call.1} parent=11 // pred_check_branch
          %163 = sbr.rel (%p161) target = $region16
        $region15: #{tpu_custom_call.1} parent=11 // pred_region
          %s165 = ssub.s32 1152, 1152
          %166 = vsyncadd [#allocation6], %s165
          %s167 = sshll.u32 [#allocation5], 4
          %s168 = int_to_ptr.vmem [resolvable:$true] %s167
          %173 = dma.hbm_to_vmem [thread:$0]  %s1, 1152, %s168, [#allocation6], 64, 64, 4
        $region16: #{tpu_custom_call.1} parent=11 // pred_fallthru
          _
        // Predicated region
        $region17: #{tpu_custom_call.1} parent=11 // pred_check
          %p174 = pneg %p97
        $region18: #{tpu_custom_call.1} parent=11 // pred_check_branch
          %176 = sbr.rel (%p174) target = $region20
        $region19: #{tpu_custom_call.1} parent=11 // pred_region
          _
        $region20: #{tpu_custom_call.1} parent=11 // pred_fallthru
          _
        // Predicated region
        $region21: #{tpu_custom_call.1} parent=11 // pred_check
          %p177 = pneg %p118
        $region22: #{tpu_custom_call.1} parent=11 // pred_check_branch
          %179 = sbr.rel (%p177) target = $region24
        $region23: #{tpu_custom_call.1} parent=11 // pred_region
          _
        $region24: #{tpu_custom_call.1} parent=11 // pred_fallthru
          _
      $region12: #{tpu_custom_call.1} parent=5 // pred_fallthru
        _
      %p180 = scmp.lt.s32.totalorder %s17, 2
      // Predicated region
      $region25: #{tpu_custom_call.1} parent=5 // pred_check
        %p181 = pneg %p180
      $region26: #{tpu_custom_call.1} parent=5 // pred_check_branch
        %183 = sbr.rel (%p181) target = $region28
      $region27: #{tpu_custom_call.1} parent=5 // pred_region
        // Predicated region
        $region29: #{tpu_custom_call.1} parent=27 // pred_check
          %p184 = pneg %p49
        $region30: #{tpu_custom_call.1} parent=27 // pred_check_branch
          %186 = sbr.rel (%p184) target = $region32
        $region31: #{tpu_custom_call.1} parent=27 // pred_region
          %s187 = sand.u32 %s39, 1
          %s188 = scalar_lea.sflag [#allocation3], %s187
          %s189 = sand.u32 %s39, 1
          %s190 = smul.addr %s189, 144
          %s191 = scalar_lea.vmem [#allocation2], %s190
          %s193 = ssub.s32 2304, 2304
          %194 = vsyncadd %s188, %s193
          %s195 = smul.addr %s24, 36
          %s196 = smul.addr %s195, 64
          %s197 = scalar_lea.hbm %s0, %s196
          %s198 = sshll.u32 %s191, 4
          %s199 = int_to_ptr.vmem [resolvable:$true] %s198
          %204 = dma.hbm_to_vmem [thread:$0]  %s197, 2304, %s199, %s188, 64, 64, 4
        $region32: #{tpu_custom_call.1} parent=27 // pred_fallthru
          _
      $region28: #{tpu_custom_call.1} parent=5 // pred_fallthru
        _
      %p205 = scmp.le.s32.totalorder 1, %s17
      %p206 = scmp.lt.s32.totalorder %s17, 3
      %p207 = pnand %p205, %p206
      %p208 = pneg %p207
      // Predicated region
      $region33: #{tpu_custom_call.1} parent=5 // pred_check
        _
      $region34: #{tpu_custom_call.1} parent=5 // pred_check_branch
        %210 = sbr.rel (%p207) target = $region36
      $region35: #{tpu_custom_call.1} parent=5 // pred_region
        %s211 = ssub.s32 %s17, 1
        %s212 = sand.u32 %s42, 1
        %s213 = scalar_lea.sflag [#allocation3], %s212
        %s214 = sand.u32 %s42, 1
        %s215 = smul.addr %s214, 144
        %s216 = scalar_lea.vmem [#allocation2], %s215
        // Predicated region
        $region37: #{tpu_custom_call.1} parent=35 // pred_check
          %p217 = pneg %p55
        $region38: #{tpu_custom_call.1} parent=35 // pred_check_branch
          %219 = sbr.rel (%p217) target = $region40
        $region39: #{tpu_custom_call.1} parent=35 // pred_region
          %220 = dma.done %s213, 2304
        $region40: #{tpu_custom_call.1} parent=35 // pred_fallthru
          _
        // Predicated region
        $region41: #{tpu_custom_call.1} parent=35 // pred_check
          %p221 = pneg %p76
        $region42: #{tpu_custom_call.1} parent=35 // pred_check_branch
          %223 = sbr.rel (%p221) target = $region44
        $region43: #{tpu_custom_call.1} parent=35 // pred_region
          %224 = dma.done [#allocation6], 1152
        $region44: #{tpu_custom_call.1} parent=35 // pred_fallthru
          _
        %s225 = sand.u32 %s42, 1
        %s226 = scalar_lea.sflag [#allocation3], %s225
        %s227 = sand.u32 %s42, 1
        %s228 = smul.addr %s227, 144
        %s229 = scalar_lea.vmem [#allocation2], %s228
        %p230 = pneg %p55
        %p231 = pneg %p52
        %p232 = pneg %p76
        %p233 = pneg %p73
        %p234 = pneg %p97
        %p235 = pneg %p94
        %p236 = pneg %p118
        %p237 = pneg %p115
        %p238 = pneg %p146
        %p239 = pneg %p143
        %s240 = sand.u32 %s133, 1
        %s241 = scalar_lea.sflag [#allocation4], %s240
        %s242 = sand.u32 %s133, 1
        %s243 = smul.addr %s242, 256
        %s244 = scalar_lea.vmem [#allocation7], %s243
        %s245 = smul.u32 16, %s27
        %s247 = smul.u32 %s27, 16
        %v248 = vld [vmem:[%s2] sm:$0xff]
        %v249 = vld [vmem:[%s2 + $0x8] sm:$0xff]
        %251 = vset.pattern.permute.xlu0 0
        %252 = vperm.xlu0 %251, %v248
        %v253 = vpop.permute.xlu0 %252
        %256 = vset.pattern.permute.xlu0 0
        %257 = vperm.xlu0 %256, %v249
        %v258 = vpop.permute.xlu0 %257
        %v260 = vld [vmem:[%s3] sm:$0xff]
        %v261 = vld [vmem:[%s3 + $0x8] sm:$0xff]
        %263 = vset.pattern.permute.xlu0 0
        %264 = vperm.xlu0 %263, %v260
        %v265 = vpop.permute.xlu0 %264
        %268 = vset.pattern.permute.xlu0 0
        %269 = vperm.xlu0 %268, %v261
        %v270 = vpop.permute.xlu0 %269
        loop: start=0, step=1, limit=16
        $region45: #{tpu_custom_call.1} parent=35 // loop_pre_header
          _
        $region46: #{tpu_custom_call.1} parent=35 // loop_header
          %s273 = sphi 0, %s277
          %p274 = scmp.ge.s32.totalorder %s273, 16
        $region47: #{tpu_custom_call.1} parent=35 // loop_header_branch
          %276 = sbr.rel (%p274) target = $region51
        $region48: #{tpu_custom_call.1} parent=35 // loop_body
          %s278 = sadd.s32 %s247, %s273
          %s279 = smul.u32 %s278, 2
          %s280 = smul.addr %s279, 4
          %s281 = scalar_lea.vmem %s216, %s280 [#allocation2]
          %v282 = vld [vmem:[%s281] sm:$0xf]
          %v283 = vld [vmem:[%s281 + $0x4] sm:$0xf]
          %v284 = vld [vmem:[#allocation5] sm:$0xf]
          %v285 = vld [vmem:[#allocation5 + $0x4] sm:$0xf]
          %s286 = scalar_lea.vmem [#allocation5], 8
          %v287 = vld [vmem:[%s286] sm:$0xf]
          %v288 = vld [vmem:[%s286 + $0x4] sm:$0xf]
          %v291 = vunpack.c.l.b16 %v287
          %v292 = vunpack.c.l.b16 %v288
          %v293 = vpack.c.b16 %v292, %v291
          %v296 = vunpack.c.l.b16 %v282
          %v297 = vunpack.c.l.b16 %v283
          %v298 = vpack.c.b16 %v297, %v296
          %299 = vrot.lane.b32.xlu0 %v298, 127
          %v300 = vpop.permute.xlu0 %299
          %vm302 = vcmask 130048
          %v304 = vsel %vm302, %v293, 0
          %306 = vmatprep.subr.bf16.mxu0 0
          %307 = vmatpush1.bf16.msra.mxu0 %v300
          %308 = vmatprep.subr.bf16.mxu0 0
          %309 = vmatpush1.bf16.msra.mxu0 0
          %310 = vmatprep.subr.bf16.mxu0 0
          %311 = vmatpush1.bf16.msra.mxu0 0
          %312 = vmatprep.subr.bf16.mxu0 0
          %313 = vmatpush1.bf16.msra.mxu0 0
          %314 = vmatprep.subr.bf16.mxu0 0
          %315 = vmatpush1.bf16.msra.mxu0 0
          %316 = vmatprep.subr.bf16.mxu0 0
          %317 = vmatpush1.bf16.msra.mxu0 0
          %318 = vmatprep.subr.bf16.mxu0 0
          %319 = vmatpush1.bf16.msra.mxu0 0
          %320 = vmatprep.subr.bf16.mxu0 0
          %321 = vmatpush1.bf16.msra.mxu0 0
          %322 = vmatprep.subr.bf16.mxu0 0
          %323 = vmatpush1.bf16.msra.mxu0 0
          %324 = vmatprep.subr.bf16.mxu0 0
          %325 = vmatpush1.bf16.msra.mxu0 0
          %326 = vmatprep.subr.bf16.mxu0 0
          %327 = vmatpush1.bf16.msra.mxu0 0
          %328 = vmatprep.subr.bf16.mxu0 0
          %329 = vmatpush1.bf16.msra.mxu0 0
          %330 = vmatprep.subr.bf16.mxu0 0
          %331 = vmatpush1.bf16.msra.mxu0 0
          %332 = vmatprep.subr.bf16.mxu0 0
          %333 = vmatpush1.bf16.msra.mxu0 0
          %334 = vmatprep.subr.bf16.mxu0 0
          %335 = vmatpush1.bf16.msra.mxu0 0
          %336 = vmatprep.subr.bf16.mxu0 0
          %337 = vmatpush1.bf16.msra.mxu0 0
          %338 = vmatprep.mubr.bf16.mxu0 0
          %339 = vmatmul.mubr.bf16.gmra.mrb[0].mxu0 %v304
          %v340 = vpop.f32.mrb[0].mxu0
          %v341 = vadd.f32 0.0, %v340
          %v342 = vpop.f32.mrb[0].mxu0
          %v343 = vpop.f32.mrb[0].mxu0
          %v344 = vadd.f32 0.0, %v343
          %v345 = vpop.f32.mrb[0].mxu0
          %346 = vdwg.mxu0
          %v349 = vunpack.c.l.b16 %v284
          %v350 = vunpack.c.l.b16 %v285
          %v351 = vpack.c.b16 %v350, %v349
          %v354 = vsel %vm302, %v351, 0
          %356 = vmatprep.subr.bf16.mxu0 0
          %357 = vmatpush1.bf16.msra.mxu0 %v298
          %358 = vmatprep.subr.bf16.mxu0 0
          %359 = vmatpush1.bf16.msra.mxu0 0
          %360 = vmatprep.subr.bf16.mxu0 0
          %361 = vmatpush1.bf16.msra.mxu0 0
          %362 = vmatprep.subr.bf16.mxu0 0
          %363 = vmatpush1.bf16.msra.mxu0 0
          %364 = vmatprep.subr.bf16.mxu0 0
          %365 = vmatpush1.bf16.msra.mxu0 0
          %366 = vmatprep.subr.bf16.mxu0 0
          %367 = vmatpush1.bf16.msra.mxu0 0
          %368 = vmatprep.subr.bf16.mxu0 0
          %369 = vmatpush1.bf16.msra.mxu0 0
          %370 = vmatprep.subr.bf16.mxu0 0
          %371 = vmatpush1.bf16.msra.mxu0 0
          %372 = vmatprep.subr.bf16.mxu0 0
          %373 = vmatpush1.bf16.msra.mxu0 0
          %374 = vmatprep.subr.bf16.mxu0 0
          %375 = vmatpush1.bf16.msra.mxu0 0
          %376 = vmatprep.subr.bf16.mxu0 0
          %377 = vmatpush1.bf16.msra.mxu0 0
          %378 = vmatprep.subr.bf16.mxu0 0
          %379 = vmatpush1.bf16.msra.mxu0 0
          %380 = vmatprep.subr.bf16.mxu0 0
          %381 = vmatpush1.bf16.msra.mxu0 0
          %382 = vmatprep.subr.bf16.mxu0 0
          %383 = vmatpush1.bf16.msra.mxu0 0
          %384 = vmatprep.subr.bf16.mxu0 0
          %385 = vmatpush1.bf16.msra.mxu0 0
          %386 = vmatprep.subr.bf16.mxu0 0
          %387 = vmatpush1.bf16.msra.mxu0 0
          %388 = vmatprep.mubr.bf16.mxu0 0
          %389 = vmatmul.mubr.bf16.gmra.mrb[0].mxu0 %v354
          %v390 = vpop.f32.mrb[0].mxu0
          %v391 = vadd.f32 %v341, %v390
          %v392 = vpop.f32.mrb[0].mxu0
          %v393 = vpop.f32.mrb[0].mxu0
          %v394 = vadd.f32 %v344, %v393
          %v395 = vpop.f32.mrb[0].mxu0
          %396 = vdwg.mxu0
          %s397 = scalar_lea.vmem [#allocation5], 16
          %v398 = vld [vmem:[%s397] sm:$0xf]
          %v399 = vld [vmem:[%s397 + $0x4] sm:$0xf]
          %v402 = vunpack.c.l.b16 %v398
          %v403 = vunpack.c.l.b16 %v399
          %v404 = vpack.c.b16 %v403, %v402
          %405 = vrot.lane.b32.xlu0 %v298, 126
          %v406 = vpop.permute.xlu0 %405
          %v409 = vsel %vm302, %v404, 0
          %411 = vmatprep.subr.bf16.mxu0 0
          %412 = vmatpush1.bf16.msra.mxu0 %v406
          %413 = vmatprep.subr.bf16.mxu0 0
          %414 = vmatpush1.bf16.msra.mxu0 0
          %415 = vmatprep.subr.bf16.mxu0 0
          %416 = vmatpush1.bf16.msra.mxu0 0
          %417 = vmatprep.subr.bf16.mxu0 0
          %418 = vmatpush1.bf16.msra.mxu0 0
          %419 = vmatprep.subr.bf16.mxu0 0
          %420 = vmatpush1.bf16.msra.mxu0 0
          %421 = vmatprep.subr.bf16.mxu0 0
          %422 = vmatpush1.bf16.msra.mxu0 0
          %423 = vmatprep.subr.bf16.mxu0 0
          %424 = vmatpush1.bf16.msra.mxu0 0
          %425 = vmatprep.subr.bf16.mxu0 0
          %426 = vmatpush1.bf16.msra.mxu0 0
          %427 = vmatprep.subr.bf16.mxu0 0
          %428 = vmatpush1.bf16.msra.mxu0 0
          %429 = vmatprep.subr.bf16.mxu0 0
          %430 = vmatpush1.bf16.msra.mxu0 0
          %431 = vmatprep.subr.bf16.mxu0 0
          %432 = vmatpush1.bf16.msra.mxu0 0
          %433 = vmatprep.subr.bf16.mxu0 0
          %434 = vmatpush1.bf16.msra.mxu0 0
          %435 = vmatprep.subr.bf16.mxu0 0
          %436 = vmatpush1.bf16.msra.mxu0 0
          %437 = vmatprep.subr.bf16.mxu0 0
          %438 = vmatpush1.bf16.msra.mxu0 0
          %439 = vmatprep.subr.bf16.mxu0 0
          %440 = vmatpush1.bf16.msra.mxu0 0
          %441 = vmatprep.subr.bf16.mxu0 0
          %442 = vmatpush1.bf16.msra.mxu0 0
          %443 = vmatprep.mubr.bf16.mxu0 0
          %444 = vmatmul.mubr.bf16.gmra.mrb[0].mxu0 %v409
          %v445 = vpop.f32.mrb[0].mxu0
          %v446 = vadd.f32 0.0, %v445
          %v447 = vpop.f32.mrb[0].mxu0
          %v448 = vpop.f32.mrb[0].mxu0
          %v449 = vadd.f32 0.0, %v448
          %v450 = vpop.f32.mrb[0].mxu0
          %451 = vdwg.mxu0
          %v452 = vadd.f32 %v391, %v446
          %v453 = vadd.f32 %v394, %v449
          %s454 = sadd.s32 %s278, 1
          %s455 = smul.u32 %s454, 2
          %s456 = smul.addr %s455, 4
          %s457 = scalar_lea.vmem %s216, %s456 [#allocation2]
          %v458 = vld [vmem:[%s457] sm:$0xf]
          %v459 = vld [vmem:[%s457 + $0x4] sm:$0xf]
          %s460 = scalar_lea.vmem [#allocation5], 24
          %v461 = vld [vmem:[%s460] sm:$0xf]
          %v462 = vld [vmem:[%s460 + $0x4] sm:$0xf]
          %v465 = vunpack.c.l.b16 %v461
          %v466 = vunpack.c.l.b16 %v462
          %v467 = vpack.c.b16 %v466, %v465
          %v470 = vunpack.c.l.b16 %v458
          %v471 = vunpack.c.l.b16 %v459
          %v472 = vpack.c.b16 %v471, %v470
          %v475 = vsel %vm302, %v467, 0
          %477 = vmatprep.subr.bf16.mxu0 0
          %478 = vmatpush1.bf16.msra.mxu0 %v472
          %479 = vmatprep.subr.bf16.mxu0 0
          %480 = vmatpush1.bf16.msra.mxu0 0
          %481 = vmatprep.subr.bf16.mxu0 0
          %482 = vmatpush1.bf16.msra.mxu0 0
          %483 = vmatprep.subr.bf16.mxu0 0
          %484 = vmatpush1.bf16.msra.mxu0 0
          %485 = vmatprep.subr.bf16.mxu0 0
          %486 = vmatpush1.bf16.msra.mxu0 0
          %487 = vmatprep.subr.bf16.mxu0 0
          %488 = vmatpush1.bf16.msra.mxu0 0
          %489 = vmatprep.subr.bf16.mxu0 0
          %490 = vmatpush1.bf16.msra.mxu0 0
          %491 = vmatprep.subr.bf16.mxu0 0
          %492 = vmatpush1.bf16.msra.mxu0 0
          %493 = vmatprep.subr.bf16.mxu0 0
          %494 = vmatpush1.bf16.msra.mxu0 0
          %495 = vmatprep.subr.bf16.mxu0 0
          %496 = vmatpush1.bf16.msra.mxu0 0
          %497 = vmatprep.subr.bf16.mxu0 0
          %498 = vmatpush1.bf16.msra.mxu0 0
          %499 = vmatprep.subr.bf16.mxu0 0
          %500 = vmatpush1.bf16.msra.mxu0 0
          %501 = vmatprep.subr.bf16.mxu0 0
          %502 = vmatpush1.bf16.msra.mxu0 0
          %503 = vmatprep.subr.bf16.mxu0 0
          %504 = vmatpush1.bf16.msra.mxu0 0
          %505 = vmatprep.subr.bf16.mxu0 0
          %506 = vmatpush1.bf16.msra.mxu0 0
          %507 = vmatprep.subr.bf16.mxu0 0
          %508 = vmatpush1.bf16.msra.mxu0 0
          %509 = vmatprep.mubr.bf16.mxu0 0
          %510 = vmatmul.mubr.bf16.gmra.mrb[0].mxu0 %v475
          %v511 = vpop.f32.mrb[0].mxu0
          %v512 = vadd.f32 0.0, %v511
          %v513 = vpop.f32.mrb[0].mxu0
          %v514 = vpop.f32.mrb[0].mxu0
          %v515 = vadd.f32 0.0, %v514
          %v516 = vpop.f32.mrb[0].mxu0
          %517 = vdwg.mxu0
          %v518 = vadd.f32 %v452, %v512
          %v519 = vadd.f32 %v453, %v515
          %s520 = scalar_lea.vmem [#allocation5], 32
          %v521 = vld [vmem:[%s520] sm:$0xf]
          %v522 = vld [vmem:[%s520 + $0x4] sm:$0xf]
          %v525 = vunpack.c.l.b16 %v521
          %v526 = vunpack.c.l.b16 %v522
          %v527 = vpack.c.b16 %v526, %v525
          %528 = vrot.lane.b32.xlu0 %v472, 127
          %v529 = vpop.permute.xlu0 %528
          %v532 = vsel %vm302, %v527, 0
          %534 = vmatprep.subr.bf16.mxu0 0
          %535 = vmatpush1.bf16.msra.mxu0 %v529
          %536 = vmatprep.subr.bf16.mxu0 0
          %537 = vmatpush1.bf16.msra.mxu0 0
          %538 = vmatprep.subr.bf16.mxu0 0
          %539 = vmatpush1.bf16.msra.mxu0 0
          %540 = vmatprep.subr.bf16.mxu0 0
          %541 = vmatpush1.bf16.msra.mxu0 0
          %542 = vmatprep.subr.bf16.mxu0 0
          %543 = vmatpush1.bf16.msra.mxu0 0
          %544 = vmatprep.subr.bf16.mxu0 0
          %545 = vmatpush1.bf16.msra.mxu0 0
          %546 = vmatprep.subr.bf16.mxu0 0
          %547 = vmatpush1.bf16.msra.mxu0 0
          %548 = vmatprep.subr.bf16.mxu0 0
          %549 = vmatpush1.bf16.msra.mxu0 0
          %550 = vmatprep.subr.bf16.mxu0 0
          %551 = vmatpush1.bf16.msra.mxu0 0
          %552 = vmatprep.subr.bf16.mxu0 0
          %553 = vmatpush1.bf16.msra.mxu0 0
          %554 = vmatprep.subr.bf16.mxu0 0
          %555 = vmatpush1.bf16.msra.mxu0 0
          %556 = vmatprep.subr.bf16.mxu0 0
          %557 = vmatpush1.bf16.msra.mxu0 0
          %558 = vmatprep.subr.bf16.mxu0 0
          %559 = vmatpush1.bf16.msra.mxu0 0
          %560 = vmatprep.subr.bf16.mxu0 0
          %561 = vmatpush1.bf16.msra.mxu0 0
          %562 = vmatprep.subr.bf16.mxu0 0
          %563 = vmatpush1.bf16.msra.mxu0 0
          %564 = vmatprep.subr.bf16.mxu0 0
          %565 = vmatpush1.bf16.msra.mxu0 0
          %566 = vmatprep.mubr.bf16.mxu0 0
          %567 = vmatmul.mubr.bf16.gmra.mrb[0].mxu0 %v532
          %v568 = vpop.f32.mrb[0].mxu0
          %v569 = vadd.f32 0.0, %v568
          %v570 = vpop.f32.mrb[0].mxu0
          %v571 = vpop.f32.mrb[0].mxu0
          %v572 = vadd.f32 0.0, %v571
          %v573 = vpop.f32.mrb[0].mxu0
          %574 = vdwg.mxu0
          %v575 = vadd.f32 %v518, %v569
          %v576 = vadd.f32 %v519, %v572
          %s577 = scalar_lea.vmem [#allocation5], 40
          %v578 = vld [vmem:[%s577] sm:$0xf]
          %v579 = vld [vmem:[%s577 + $0x4] sm:$0xf]
          %v582 = vunpack.c.l.b16 %v578
          %v583 = vunpack.c.l.b16 %v579
          %v584 = vpack.c.b16 %v583, %v582
          %585 = vrot.lane.b32.xlu0 %v472, 126
          %v586 = vpop.permute.xlu0 %585
          %v589 = vsel %vm302, %v584, 0
          %591 = vmatprep.subr.bf16.mxu0 0
          %592 = vmatpush1.bf16.msra.mxu0 %v586
          %593 = vmatprep.subr.bf16.mxu0 0
          %594 = vmatpush1.bf16.msra.mxu0 0
          %595 = vmatprep.subr.bf16.mxu0 0
          %596 = vmatpush1.bf16.msra.mxu0 0
          %597 = vmatprep.subr.bf16.mxu0 0
          %598 = vmatpush1.bf16.msra.mxu0 0
          %599 = vmatprep.subr.bf16.mxu0 0
          %600 = vmatpush1.bf16.msra.mxu0 0
          %601 = vmatprep.subr.bf16.mxu0 0
          %602 = vmatpush1.bf16.msra.mxu0 0
          %603 = vmatprep.subr.bf16.mxu0 0
          %604 = vmatpush1.bf16.msra.mxu0 0
          %605 = vmatprep.subr.bf16.mxu0 0
          %606 = vmatpush1.bf16.msra.mxu0 0
          %607 = vmatprep.subr.bf16.mxu0 0
          %608 = vmatpush1.bf16.msra.mxu0 0
          %609 = vmatprep.subr.bf16.mxu0 0
          %610 = vmatpush1.bf16.msra.mxu0 0
          %611 = vmatprep.subr.bf16.mxu0 0
          %612 = vmatpush1.bf16.msra.mxu0 0
          %613 = vmatprep.subr.bf16.mxu0 0
          %614 = vmatpush1.bf16.msra.mxu0 0
          %615 = vmatprep.subr.bf16.mxu0 0
          %616 = vmatpush1.bf16.msra.mxu0 0
          %617 = vmatprep.subr.bf16.mxu0 0
          %618 = vmatpush1.bf16.msra.mxu0 0
          %619 = vmatprep.subr.bf16.mxu0 0
          %620 = vmatpush1.bf16.msra.mxu0 0
          %621 = vmatprep.subr.bf16.mxu0 0
          %622 = vmatpush1.bf16.msra.mxu0 0
          %623 = vmatprep.mubr.bf16.mxu0 0
          %624 = vmatmul.mubr.bf16.gmra.mrb[0].mxu0 %v589
          %v625 = vpop.f32.mrb[0].mxu0
          %v626 = vadd.f32 0.0, %v625
          %v627 = vpop.f32.mrb[0].mxu0
          %v628 = vpop.f32.mrb[0].mxu0
          %v629 = vadd.f32 0.0, %v628
          %v630 = vpop.f32.mrb[0].mxu0
          %631 = vdwg.mxu0
          %v632 = vadd.f32 %v575, %v626
          %v633 = vadd.f32 %v576, %v629
          %s634 = sadd.s32 %s278, 2
          %s635 = smul.u32 %s634, 2
          %s636 = smul.addr %s635, 4
          %s637 = scalar_lea.vmem %s216, %s636 [#allocation2]
          %v638 = vld [vmem:[%s637] sm:$0xf]
          %v639 = vld [vmem:[%s637 + $0x4] sm:$0xf]
          %s640 = scalar_lea.vmem [#allocation5], 48
          %v641 = vld [vmem:[%s640] sm:$0xf]
          %v642 = vld [vmem:[%s640 + $0x4] sm:$0xf]
          %v645 = vunpack.c.l.b16 %v641
          %v646 = vunpack.c.l.b16 %v642
          %v647 = vpack.c.b16 %v646, %v645
          %v650 = vunpack.c.l.b16 %v638
          %v651 = vunpack.c.l.b16 %v639
          %v652 = vpack.c.b16 %v651, %v650
          %v655 = vsel %vm302, %v647, 0
          %657 = vmatprep.subr.bf16.mxu0 0
          %658 = vmatpush1.bf16.msra.mxu0 %v652
          %659 = vmatprep.subr.bf16.mxu0 0
          %660 = vmatpush1.bf16.msra.mxu0 0
          %661 = vmatprep.subr.bf16.mxu0 0
          %662 = vmatpush1.bf16.msra.mxu0 0
          %663 = vmatprep.subr.bf16.mxu0 0
          %664 = vmatpush1.bf16.msra.mxu0 0
          %665 = vmatprep.subr.bf16.mxu0 0
          %666 = vmatpush1.bf16.msra.mxu0 0
          %667 = vmatprep.subr.bf16.mxu0 0
          %668 = vmatpush1.bf16.msra.mxu0 0
          %669 = vmatprep.subr.bf16.mxu0 0
          %670 = vmatpush1.bf16.msra.mxu0 0
          %671 = vmatprep.subr.bf16.mxu0 0
          %672 = vmatpush1.bf16.msra.mxu0 0
          %673 = vmatprep.subr.bf16.mxu0 0
          %674 = vmatpush1.bf16.msra.mxu0 0
          %675 = vmatprep.subr.bf16.mxu0 0
          %676 = vmatpush1.bf16.msra.mxu0 0
          %677 = vmatprep.subr.bf16.mxu0 0
          %678 = vmatpush1.bf16.msra.mxu0 0
          %679 = vmatprep.subr.bf16.mxu0 0
          %680 = vmatpush1.bf16.msra.mxu0 0
          %681 = vmatprep.subr.bf16.mxu0 0
          %682 = vmatpush1.bf16.msra.mxu0 0
          %683 = vmatprep.subr.bf16.mxu0 0
          %684 = vmatpush1.bf16.msra.mxu0 0
          %685 = vmatprep.subr.bf16.mxu0 0
          %686 = vmatpush1.bf16.msra.mxu0 0
          %687 = vmatprep.subr.bf16.mxu0 0
          %688 = vmatpush1.bf16.msra.mxu0 0
          %689 = vmatprep.mubr.bf16.mxu0 0
          %690 = vmatmul.mubr.bf16.gmra.mrb[0].mxu0 %v655
          %v691 = vpop.f32.mrb[0].mxu0
          %v692 = vadd.f32 0.0, %v691
          %v693 = vpop.f32.mrb[0].mxu0
          %v694 = vpop.f32.mrb[0].mxu0
          %v695 = vadd.f32 0.0, %v694
          %v696 = vpop.f32.mrb[0].mxu0
          %697 = vdwg.mxu0
          %v698 = vadd.f32 %v632, %v692
          %v699 = vadd.f32 %v633, %v695
          %s700 = scalar_lea.vmem [#allocation5], 56
          %v701 = vld [vmem:[%s700] sm:$0xf]
          %v702 = vld [vmem:[%s700 + $0x4] sm:$0xf]
          %v705 = vunpack.c.l.b16 %v701
          %v706 = vunpack.c.l.b16 %v702
          %v707 = vpack.c.b16 %v706, %v705
          %708 = vrot.lane.b32.xlu0 %v652, 127
          %v709 = vpop.permute.xlu0 %708
          %v712 = vsel %vm302, %v707, 0
          %714 = vmatprep.subr.bf16.mxu0 0
          %715 = vmatpush1.bf16.msra.mxu0 %v709
          %716 = vmatprep.subr.bf16.mxu0 0
          %717 = vmatpush1.bf16.msra.mxu0 0
          %718 = vmatprep.subr.bf16.mxu0 0
          %719 = vmatpush1.bf16.msra.mxu0 0
          %720 = vmatprep.subr.bf16.mxu0 0
          %721 = vmatpush1.bf16.msra.mxu0 0
          %722 = vmatprep.subr.bf16.mxu0 0
          %723 = vmatpush1.bf16.msra.mxu0 0
          %724 = vmatprep.subr.bf16.mxu0 0
          %725 = vmatpush1.bf16.msra.mxu0 0
          %726 = vmatprep.subr.bf16.mxu0 0
          %727 = vmatpush1.bf16.msra.mxu0 0
          %728 = vmatprep.subr.bf16.mxu0 0
          %729 = vmatpush1.bf16.msra.mxu0 0
          %730 = vmatprep.subr.bf16.mxu0 0
          %731 = vmatpush1.bf16.msra.mxu0 0
          %732 = vmatprep.subr.bf16.mxu0 0
          %733 = vmatpush1.bf16.msra.mxu0 0
          %734 = vmatprep.subr.bf16.mxu0 0
          %735 = vmatpush1.bf16.msra.mxu0 0
          %736 = vmatprep.subr.bf16.mxu0 0
          %737 = vmatpush1.bf16.msra.mxu0 0
          %738 = vmatprep.subr.bf16.mxu0 0
          %739 = vmatpush1.bf16.msra.mxu0 0
          %740 = vmatprep.subr.bf16.mxu0 0
          %741 = vmatpush1.bf16.msra.mxu0 0
          %742 = vmatprep.subr.bf16.mxu0 0
          %743 = vmatpush1.bf16.msra.mxu0 0
          %744 = vmatprep.subr.bf16.mxu0 0
          %745 = vmatpush1.bf16.msra.mxu0 0
          %746 = vmatprep.mubr.bf16.mxu0 0
          %747 = vmatmul.mubr.bf16.gmra.mrb[0].mxu0 %v712
          %v748 = vpop.f32.mrb[0].mxu0
          %v749 = vadd.f32 0.0, %v748
          %v750 = vpop.f32.mrb[0].mxu0
          %v751 = vpop.f32.mrb[0].mxu0
          %v752 = vadd.f32 0.0, %v751
          %v753 = vpop.f32.mrb[0].mxu0
          %754 = vdwg.mxu0
          %v755 = vadd.f32 %v698, %v749
          %v756 = vadd.f32 %v699, %v752
          %s757 = scalar_lea.vmem [#allocation5], 64
          %v758 = vld [vmem:[%s757] sm:$0xf]
          %v759 = vld [vmem:[%s757 + $0x4] sm:$0xf]
          %v762 = vunpack.c.l.b16 %v758
          %v763 = vunpack.c.l.b16 %v759
          %v764 = vpack.c.b16 %v763, %v762
          %765 = vrot.lane.b32.xlu0 %v652, 126
          %v766 = vpop.permute.xlu0 %765
          %v769 = vsel %vm302, %v764, 0
          %771 = vmatprep.subr.bf16.mxu0 0
          %772 = vmatpush1.bf16.msra.mxu0 %v766
          %773 = vmatprep.subr.bf16.mxu0 0
          %774 = vmatpush1.bf16.msra.mxu0 0
          %775 = vmatprep.subr.bf16.mxu0 0
          %776 = vmatpush1.bf16.msra.mxu0 0
          %777 = vmatprep.subr.bf16.mxu0 0
          %778 = vmatpush1.bf16.msra.mxu0 0
          %779 = vmatprep.subr.bf16.mxu0 0
          %780 = vmatpush1.bf16.msra.mxu0 0
          %781 = vmatprep.subr.bf16.mxu0 0
          %782 = vmatpush1.bf16.msra.mxu0 0
          %783 = vmatprep.subr.bf16.mxu0 0
          %784 = vmatpush1.bf16.msra.mxu0 0
          %785 = vmatprep.subr.bf16.mxu0 0
          %786 = vmatpush1.bf16.msra.mxu0 0
          %787 = vmatprep.subr.bf16.mxu0 0
          %788 = vmatpush1.bf16.msra.mxu0 0
          %789 = vmatprep.subr.bf16.mxu0 0
          %790 = vmatpush1.bf16.msra.mxu0 0
          %791 = vmatprep.subr.bf16.mxu0 0
          %792 = vmatpush1.bf16.msra.mxu0 0
          %793 = vmatprep.subr.bf16.mxu0 0
          %794 = vmatpush1.bf16.msra.mxu0 0
          %795 = vmatprep.subr.bf16.mxu0 0
          %796 = vmatpush1.bf16.msra.mxu0 0
          %797 = vmatprep.subr.bf16.mxu0 0
          %798 = vmatpush1.bf16.msra.mxu0 0
          %799 = vmatprep.subr.bf16.mxu0 0
          %800 = vmatpush1.bf16.msra.mxu0 0
          %801 = vmatprep.subr.bf16.mxu0 0
          %802 = vmatpush1.bf16.msra.mxu0 0
          %803 = vmatprep.mubr.bf16.mxu0 0
          %804 = vmatmul.mubr.bf16.gmra.mrb[0].mxu0 %v769
          %v805 = vpop.f32.mrb[0].mxu0
          %v806 = vadd.f32 0.0, %v805
          %v807 = vpop.f32.mrb[0].mxu0
          %v808 = vpop.f32.mrb[0].mxu0
          %v809 = vadd.f32 0.0, %v808
          %v810 = vpop.f32.mrb[0].mxu0
          %811 = vdwg.mxu0
          %v812 = vadd.f32 %v755, %v806
          %v813 = vadd.f32 %v756, %v809
          %v814 = vmul.f32 %v812, %v253
          %v815 = vmul.f32 %v813, %v258
          %v816 = vadd.f32 %v814, %v265
          %v817 = vadd.f32 %v815, %v270
          %v818 = vadd.f32 %v816, 3.0
          %v819 = vadd.f32 %v817, 3.0
          %v820 = vmax.f32 %v818, 0.0
          %v821 = vmax.f32 %v819, 0.0
          %v822 = vmin.f32 %v820, 6.0
          %v823 = vmin.f32 %v821, 6.0
          %v824 = vmul.f32 %v816, %v822
          %v825 = vmul.f32 %v817, %v823
          %v826 = vmul.f32 %v824, 0.16666667
          %v827 = vmul.f32 %v825, 0.16666667
          %s828 = smul.u32 %s273, 16
          %s829 = scalar_lea.vmem %s244, %s828 [#allocation7]
          %830 = vst.msk [vmem:[%s829] sm:$0xff] %vm302, %v826
          %831 = vst.msk [vmem:[%s829 + $0x8] sm:$0xff] %vm302, %v827
        $region49: #{tpu_custom_call.1} parent=35 // loop_footer
          %s277 = sadd.s32 1, %s273
        $region50: #{tpu_custom_call.1} parent=35 // loop_footer_branch
          %272 = sbr.rel target = $region46
        $region51: #{tpu_custom_call.1} parent=35 // loop_exit
          _
        %s832 = sand.u32 %s133, 1
        %s833 = scalar_lea.sflag [#allocation4], %s832
        %s834 = sand.u32 %s133, 1
        %s835 = smul.addr %s834, 256
        %s836 = scalar_lea.vmem [#allocation7], %s835
        // Predicated region
        $region52: #{tpu_custom_call.1} parent=35 // pred_check
          %p837 = pneg %p143
        $region53: #{tpu_custom_call.1} parent=35 // pred_check_branch
          %839 = sbr.rel (%p837) target = $region55
        $region54: #{tpu_custom_call.1} parent=35 // pred_region
          %s840 = smul.u32 16, %s27
          %s842 = ssub.s32 4096, 4096
          %843 = vsyncadd %s833, %s842
          %s844 = smul.addr %s840, 2
          %s845 = smul.addr %s26, 32
          %s846 = sadd.s32 %s844, %s845
          %s847 = smul.addr %s846, 128
          %s848 = scalar_lea.hbm %s4, %s847
          %s849 = sshll.u32 %s836, 4
          %s850 = int_to_ptr.vmem [resolvable:$true] %s849
          %855 = dma.vmem_to_hbm [thread:$0]  %s850, 4096, %s848, %s833, 128, 128, 8
        $region55: #{tpu_custom_call.1} parent=35 // pred_fallthru
          _
      $region36: #{tpu_custom_call.1} parent=5 // pred_fallthru
        _
      %p856 = scmp.le.s32.totalorder 2, %s17
      // Predicated region
      $region56: #{tpu_custom_call.1} parent=5 // pred_check
        %p857 = pneg %p856
      $region57: #{tpu_custom_call.1} parent=5 // pred_check_branch
        %859 = sbr.rel (%p857) target = $region59
      $region58: #{tpu_custom_call.1} parent=5 // pred_region
        %s860 = ssub.s32 %s17, 2
        // Predicated region
        $region60: #{tpu_custom_call.1} parent=58 // pred_check
          %p861 = pneg %p149
        $region61: #{tpu_custom_call.1} parent=58 // pred_check_branch
          %863 = sbr.rel (%p861) target = $region63
        $region62: #{tpu_custom_call.1} parent=58 // pred_region
          %s864 = sand.u32 %s134, 1
          %s865 = scalar_lea.sflag [#allocation4], %s864
          %s866 = sand.u32 %s134, 1
          %s867 = smul.addr %s866, 256
          %s868 = scalar_lea.vmem [#allocation7], %s867
          %869 = dma.done %s865, 4096
        $region63: #{tpu_custom_call.1} parent=58 // pred_fallthru
          _
      $region59: #{tpu_custom_call.1} parent=5 // pred_fallthru
        _
    $region6: #{tpu_custom_call.1} parent=1 // loop_footer
      %s21 = sadd.s32 1, %s17
    $region7: #{tpu_custom_call.1} parent=1 // loop_footer_branch
      %16 = sbr.rel target = $region3
    $region8: #{tpu_custom_call.1} parent=1 // loop_exit
      _
    %870 = vsyncpa [#allocation3], 1
    %s871 = scalar_lea.sflag [#allocation3], 1
    %872 = vsyncpa %s871, 1
    %873 = vsyncpa [#allocation6], 1
    %874 = vsyncpa [#allocation4], 1
    %s875 = scalar_lea.sflag [#allocation4], 1
    %876 = vsyncpa %s875, 1

</llo_original>
